<compile_context>
chip_gen: v7x
topology: tpu7x:2x2x1
jax: 0.10.0
libtpu: 0.0.40
codegen_flags: <defaults>
</compile_context>

<pallas_src>
import functools

import numpy as np

import jax
import jax.numpy as jnp
from jax.experimental import pallas as pl
from jax.experimental.pallas import tpu as pltpu


def _round_up(x: int, m: int) -> int:
    return (x + m - 1) // m * m


def _embedding_kernel(x_ref, w_e_ref, b_e_ref, w_c_ref, b_c_ref,
                      emb_ref, logits_ref):
    """Fused per-tile: emb = x @ W_e + b_e ; logits = emb @ W_c + b_c.

    x arrives as f32 and is cast to bf16 in-register (free under the DMA
    bound); both dots accumulate in f32 and add f32 biases.
    """
    x_bf16 = x_ref[...].astype(jnp.bfloat16)
    emb = (
        jnp.dot(x_bf16, w_e_ref[...], preferred_element_type=jnp.float32)
        + b_e_ref[...]
    )
    emb_ref[...] = emb.astype(emb_ref.dtype)
    # Second matmul reads the intermediate back from the (VMEM-resident)
    # output block: explicit round-trip instead of a silent vreg spill for
    # large row tiles. Filler cost while the kernel is HBM-bound.
    logits_ref[...] = (
        jnp.dot(emb_ref[...].astype(jnp.bfloat16), w_c_ref[...],
                preferred_element_type=jnp.float32)
        + b_c_ref[...]
    ).astype(logits_ref.dtype)


def prepare_embedding_params(w_emb, b_emb, w_cls, b_cls):
    """One-time pad + bf16 cast of the module parameters.

    Call this once (e.g. at module init / weight load), NOT per forward call,
    so the per-call path never re-reads/re-writes the weight matrices in HBM
    just to pad them.

    Output dims E and C are zero-padded to multiples of 128 (lane-dense,
    unmasked full-width stores); the contraction dims (D and E on the
    classifier side) are exact under zero padding.
    """
    D, E = w_emb.shape
    C = w_cls.shape[1]
    e_pad = _round_up(E, 128)
    c_pad = _round_up(C, 128)

    w_e_p = jnp.zeros((D, e_pad), jnp.bfloat16).at[:, :E].set(
        w_emb.astype(jnp.bfloat16))
    b_e_p = jnp.zeros((1, e_pad), jnp.float32).at[:, :E].set(
        jnp.reshape(b_emb, (1, E)).astype(jnp.float32))
    w_c_p = jnp.zeros((e_pad, c_pad), jnp.bfloat16).at[:E, :C].set(
        w_cls.astype(jnp.bfloat16))
    b_c_p = jnp.zeros((1, c_pad), jnp.float32).at[:, :C].set(
        jnp.reshape(b_cls, (1, C)).astype(jnp.float32))
    return w_e_p, b_e_p, w_c_p, b_c_p


@functools.partial(
    jax.jit,
    static_argnames=("embedding_size", "nof_classes", "tile_n", "out_dtype"))
def embedding_generator_forward(x, w_e_p, b_e_p, w_c_p, b_c_p, *,
                                embedding_size, nof_classes,
                                tile_n=512, out_dtype=jnp.float32):
    """Fused embedding-generator forward pass as a single tiled Pallas kernel.

    Args:
      x:      [N, D] float32 input features (one row per detection).
      w_e_p:  [D, E_pad]      bf16 padded embedding weight  (prepare_embedding_params).
      b_e_p:  [1, E_pad]      f32  padded embedding bias.
      w_c_p:  [E_pad, C_pad]  bf16 padded id-classifier weight.
      b_c_p:  [1, C_pad]      f32  padded id-classifier bias.
      embedding_size: E (unpadded), for slicing the output.
      nof_classes:    C (unpadded), for slicing the output.
      tile_n: max rows of x processed per grid step (512 is the v5e/v6e
              roofline sweet spot; a VMEM budget caps it for v7x).
      out_dtype: output dtype; pass jnp.bfloat16 if downstream tolerates it to
              halve the dominant output-writeback HBM traffic.

    Returns:
      (embeddings [N, E], logits [N, C]) in `out_dtype`.
    """
    N, D = x.shape
    e_pad = w_e_p.shape[1]
    c_pad = w_c_p.shape[1]

    # Rows: pad only to the bf16 sublane-pack granularity (16), never to a
    # full tile. The pad is a no-op (no copy) when N is already aligned.
    n_pad = _round_up(N, 16)
    if n_pad != N:
        x = jnp.pad(x, ((0, n_pad - N), (0, 0)))

    in_bytes = np.dtype(x.dtype).itemsize
    out_bytes = np.dtype(out_dtype).itemsize

    # VMEM budget for tile selection (~24 MiB => safe against v7x's 32 MiB
    # scoped / 64 MiB physical VMEM; plenty of slack on v5e/v6e's 128 MiB):
    #   resident weights+biases (single-buffered)             once
    #   x tile + both output tiles (double-buffered pipeline)  2x per row
    weight_bytes = (D * e_pad + e_pad * c_pad) * 2 + (e_pad + c_pad) * 4
    budget = 24 * 1024 * 1024
    per_row = 2 * (D * in_bytes + (e_pad + c_pad) * out_bytes)
    tile_cap = max(16, (budget - weight_bytes) // per_row // 16 * 16)
    tile = max(16, min(tile_n, tile_cap, n_pad))
    grid = (pl.cdiv(n_pad, tile),)
    # NOTE(v7x): a grid of length >= 2 (ideally even) is what lets the
    # "parallel" axis load both TensorCores; for large N this holds naturally.

    flops = 2 * n_pad * (D * e_pad + e_pad * c_pad)
    bytes_accessed = (
        n_pad * D * in_bytes                     # x (streamed)
        + weight_bytes                           # weights/biases (resident)
        + n_pad * (e_pad + c_pad) * out_bytes    # outputs (streamed)
    )

    resident = dict(pipeline_mode=pl.Buffered(1))   # constant index_map -> 1 buffer

    emb_p, logits_p = pl.pallas_call(
        _embedding_kernel,
        out_shape=(
            jax.ShapeDtypeStruct((n_pad, e_pad), out_dtype),
            jax.ShapeDtypeStruct((n_pad, c_pad), out_dtype),
        ),
        grid=grid,
        in_specs=[
            # x: row tile, full (un-padded) feature dim, pipelined over the grid.
            pl.BlockSpec((tile, D), lambda i: (i, 0)),
            # Resident operands: single-buffered, DMA'd once.
            pl.BlockSpec((D, e_pad), lambda i: (0, 0), **resident),
            pl.BlockSpec((1, e_pad), lambda i: (0, 0), **resident),
            pl.BlockSpec((e_pad, c_pad), lambda i: (0, 0), **resident),
            pl.BlockSpec((1, c_pad), lambda i: (0, 0), **resident),
        ],
        out_specs=(
            pl.BlockSpec((tile, e_pad), lambda i: (i, 0)),
            pl.BlockSpec((tile, c_pad), lambda i: (i, 0)),
        ),
        compiler_params=pltpu.CompilerParams(
            dimension_semantics=("parallel",),   # megacore / dual-TC over rows
            vmem_limit_bytes=32 << 20,           # fits all gens incl. v7x
        ),
        cost_estimate=pl.CostEstimate(
            flops=flops, transcendentals=0, bytes_accessed=bytes_accessed),
    )(x, w_e_p, b_e_p, w_c_p, b_c_p)

    # Strip padding back to the module's contract shapes. (Padded rows /
    # columns beyond N/E/C hold bias-only or undefined values and must never
    # be consumed downstream.)
    return emb_p[:N, :embedding_size], logits_p[:N, :nof_classes]


if __name__ == "__main__":
    # Small, module-consistent shapes:
    #   N = 8 detections, D = 32 input features,
    #   embedding_size = 32, nof_classes = 16.
    N, D, E, C = 8, 32, 32, 16

    key = jax.random.PRNGKey(0)
    k_x, k_we, k_be, k_wc, k_bc = jax.random.split(key, 5)

    x = jax.random.normal(k_x, (N, D), dtype=jnp.float32)
    w_emb = jax.random.normal(k_we, (D, E), dtype=jnp.float32) * (1.0 / D ** 0.5)
    b_emb = jax.random.normal(k_be, (E,), dtype=jnp.float32) * 0.01
    w_cls = jax.random.normal(k_wc, (E, C), dtype=jnp.float32) * (1.0 / E ** 0.5)
    b_cls = jax.random.normal(k_bc, (C,), dtype=jnp.float32) * 0.01

    # One-time parameter preparation (pad + bf16 cast), outside the call path.
    w_e_p, b_e_p, w_c_p, b_c_p = prepare_embedding_params(
        w_emb, b_emb, w_cls, b_cls)

    emb, logits = embedding_generator_forward(
        x, w_e_p, b_e_p, w_c_p, b_c_p,
        embedding_size=E, nof_classes=C)
    jax.block_until_ready((emb, logits))

    # Reference check in plain f32 JAX. The kernel uses bf16 MXU operands with
    # f32 accumulation (and a bf16 re-round of the embedding before the id
    # head), so compare with a bf16-appropriate tolerance — this is intentional.
    emb_ref = x @ w_emb + b_emb[None, :]
    logits_ref = emb_ref @ w_cls + b_cls[None, :]
    assert emb.shape == (N, E) and logits.shape == (N, C)
    assert jnp.allclose(emb, emb_ref, atol=5e-2, rtol=5e-2), \
        float(jnp.max(jnp.abs(emb - emb_ref)))
    assert jnp.allclose(logits, logits_ref, atol=5e-2, rtol=5e-2), \
        float(jnp.max(jnp.abs(logits - logits_ref)))

    print("KERNEL_OK")
</pallas_src>

<mosaic_0001>
module attributes {stable_mosaic.version = 11 : i64} {
  func.func @_embedding_kernel(%arg0: i32, %arg1: memref<16x32xf32, #tpu.memory_space<vmem>>, %arg2: memref<32x128xbf16, #tpu.memory_space<vmem>>, %arg3: memref<1x128xf32, #tpu.memory_space<vmem>>, %arg4: memref<128x128xbf16, #tpu.memory_space<vmem>>, %arg5: memref<1x128xf32, #tpu.memory_space<vmem>>, %arg6: memref<16x128xf32, #tpu.memory_space<vmem>>, %arg7: memref<16x128xf32, #tpu.memory_space<vmem>>) attributes {dimension_semantics = [#tpu.dimension_semantics<parallel>], iteration_bounds = array<i64: 1>, scalar_prefetch = 0 : i64, scratch_operands = 0 : i64, tpu.core_type = #tpu.core_type<tc>, window_params = [{transform_indices = @transform_0, window_bounds = array<i64: 16, 32>}, {pipeline_mode = #tpu.pipeline_mode<synchronous>, transform_indices = @transform_1, window_bounds = array<i64: 32, 128>}, {pipeline_mode = #tpu.pipeline_mode<synchronous>, transform_indices = @transform_2, window_bounds = array<i64: 1, 128>}, {pipeline_mode = #tpu.pipeline_mode<synchronous>, transform_indices = @transform_3, window_bounds = array<i64: 128, 128>}, {pipeline_mode = #tpu.pipeline_mode<synchronous>, transform_indices = @transform_4, window_bounds = array<i64: 1, 128>}, {transform_indices = @transform_5, window_bounds = array<i64: 16, 128>}, {transform_indices = @transform_6, window_bounds = array<i64: 16, 128>}]} {
    %c0 = arith.constant 0 : index
    %c0_0 = arith.constant 0 : index
    %0 = vector.load %arg1[%c0, %c0_0] : memref<16x32xf32, #tpu.memory_space<vmem>>, vector<16x32xf32>
    %1 = arith.truncf %0 : vector<16x32xf32> to vector<16x32xbf16>
    %c0_1 = arith.constant 0 : index
    %c0_2 = arith.constant 0 : index
    %2 = vector.load %arg2[%c0_1, %c0_2] : memref<32x128xbf16, #tpu.memory_space<vmem>>, vector<32x128xbf16>
    %cst = arith.constant dense<0.000000e+00> : vector<16x128xf32>
    %3 = tpu.matmul %1, %2, %cst {dimension_numbers = #tpu.dot_dimension_numbers<[1], [0], [0], [1], [0, 0, 1, 1], [], []>} : vector<16x32xbf16>, vector<32x128xbf16>, vector<16x128xf32> -> vector<16x128xf32>
    %c0_3 = arith.constant 0 : index
    %c0_4 = arith.constant 0 : index
    %4 = vector.load %arg3[%c0_3, %c0_4] : memref<1x128xf32, #tpu.memory_space<vmem>>, vector<1x128xf32>
    %5 = vector.broadcast %4 : vector<1x128xf32> to vector<16x128xf32>
    %6 = arith.addf %3, %5 : vector<16x128xf32>
    %c0_5 = arith.constant 0 : index
    %c0_6 = arith.constant 0 : index
    %7 = vector.load %arg6[%c0_5, %c0_6] : memref<16x128xf32, #tpu.memory_space<vmem>>, vector<16x128xf32>
    tpu.vector_store %arg6[%c0_5, %c0_6], %6 {strides = array<i32>} : memref<16x128xf32, #tpu.memory_space<vmem>>, vector<16x128xf32>,
    %c0_7 = arith.constant 0 : index
    %c0_8 = arith.constant 0 : index
    %8 = vector.load %arg6[%c0_7, %c0_8] : memref<16x128xf32, #tpu.memory_space<vmem>>, vector<16x128xf32>
    %9 = arith.truncf %8 : vector<16x128xf32> to vector<16x128xbf16>
    %c0_9 = arith.constant 0 : index
    %c0_10 = arith.constant 0 : index
    %10 = vector.load %arg4[%c0_9, %c0_10] : memref<128x128xbf16, #tpu.memory_space<vmem>>, vector<128x128xbf16>
    %cst_11 = arith.constant dense<0.000000e+00> : vector<16x128xf32>
    %11 = tpu.matmul %9, %10, %cst_11 {dimension_numbers = #tpu.dot_dimension_numbers<[1], [0], [0], [1], [0, 0, 1, 1], [], []>} : vector<16x128xbf16>, vector<128x128xbf16>, vector<16x128xf32> -> vector<16x128xf32>
    %c0_12 = arith.constant 0 : index
    %c0_13 = arith.constant 0 : index
    %12 = vector.load %arg5[%c0_12, %c0_13] : memref<1x128xf32, #tpu.memory_space<vmem>>, vector<1x128xf32>
    %13 = vector.broadcast %12 : vector<1x128xf32> to vector<16x128xf32>
    %14 = arith.addf %11, %13 : vector<16x128xf32>
    %c0_14 = arith.constant 0 : index
    %c0_15 = arith.constant 0 : index
    %15 = vector.load %arg7[%c0_14, %c0_15] : memref<16x128xf32, #tpu.memory_space<vmem>>, vector<16x128xf32>
    tpu.vector_store %arg7[%c0_14, %c0_15], %14 {strides = array<i32>} : memref<16x128xf32, #tpu.memory_space<vmem>>, vector<16x128xf32>,
    return
  }
  func.func @transform_0(%arg0: i32) -> (i32, i32) {
    %c0_i32 = arith.constant 0 : i32
    %c0_i32_0 = arith.constant 0 : i32
    return %arg0, %c0_i32 : i32, i32
  }
  func.func @transform_1(%arg0: i32) -> (i32, i32) {
    %c0_i32 = arith.constant 0 : i32
    %c0_i32_0 = arith.constant 0 : i32
    %c0_i32_1 = arith.constant 0 : i32
    return %c0_i32, %c0_i32_0 : i32, i32
  }
  func.func @transform_2(%arg0: i32) -> (i32, i32) {
    %c0_i32 = arith.constant 0 : i32
    %c0_i32_0 = arith.constant 0 : i32
    %c0_i32_1 = arith.constant 0 : i32
    return %c0_i32, %c0_i32_0 : i32, i32
  }
  func.func @transform_3(%arg0: i32) -> (i32, i32) {
    %c0_i32 = arith.constant 0 : i32
    %c0_i32_0 = arith.constant 0 : i32
    %c0_i32_1 = arith.constant 0 : i32
    return %c0_i32, %c0_i32_0 : i32, i32
  }
  func.func @transform_4(%arg0: i32) -> (i32, i32) {
    %c0_i32 = arith.constant 0 : i32
    %c0_i32_0 = arith.constant 0 : i32
    %c0_i32_1 = arith.constant 0 : i32
    return %c0_i32, %c0_i32_0 : i32, i32
  }
  func.func @transform_5(%arg0: i32) -> (i32, i32) {
    %c0_i32 = arith.constant 0 : i32
    %c0_i32_0 = arith.constant 0 : i32
    return %arg0, %c0_i32 : i32, i32
  }
  func.func @transform_6(%arg0: i32) -> (i32, i32) {
    %c0_i32 = arith.constant 0 : i32
    %c0_i32_0 = arith.constant 0 : i32
    return %arg0, %c0_i32 : i32, i32
  }
}

</mosaic_0001>

<llo_original>
// kernel: embedding_generator_forward.1
$region0: #{embedding_generator_forward.1}
  #allocation0 [shape = 'u32[]', space=smem, size = 0x4, offset = 0x4, fixed_abs, tag = 'smem constant byte address 0x4 - core index']
  #allocation1 [shape = 'u32[144,128]{1,0:T(1,128)}', space=vmem, size = 0x12000, scoped, tag = 'internal scratch']
  %s0 = inlined_call_operand.vmem [shape: f32[16,32], index: 0, kind: input, shape index: {}]
  %s1 = inlined_call_operand.vmem [shape: bf16[32,128], index: 1, kind: input, shape index: {}]
  %s2 = inlined_call_operand.vmem [shape: f32[1,128], index: 2, kind: input, shape index: {}]
  %s3 = inlined_call_operand.hbm [shape: bf16[128,128], index: 3, kind: input, shape index: {}]
  %s4 = inlined_call_operand.vmem [shape: f32[1,128], index: 4, kind: input, shape index: {}]
  %s5 = inlined_call_operand.vmem [shape: f32[16,128], index: 5, kind: output, shape index: {0}]
  %s6 = inlined_call_operand.vmem [shape: f32[16,128], index: 6, kind: output, shape index: {1}]
  %7 = xla_tuple %s5, %s6
  %s8 = sld [smem:[#allocation0]]
  $region42: #{embedding_generator_forward.1} parent=0
    _
  %s10 = ssub.s32 1, %s8
  %s11 = scalar_select 0, %s10, %s8
  $region1: #{embedding_generator_forward.1} parent=0
    #allocation2 [shape = 'u8[32768]{0}', space=vmem, size = 0x8000, scoped, tag = 'input window, operand 3, single buffered']
    #allocation3 [shape = 's32[1]{0}', space=sflag, size = 0x4, scoped, tag = 'scoped memory for embedding_generator_forward.1']
    %12 = vsyncpa [#allocation3], 0
    // Predicated region
    $region2: #{embedding_generator_forward.1} parent=1 // pred_check
      _
    $region3: #{embedding_generator_forward.1} parent=1 // pred_check_branch
      %14 = sbr.rel (0) target = $region5
    $region4: #{embedding_generator_forward.1} parent=1 // pred_region
      _
    $region5: #{embedding_generator_forward.1} parent=1 // pred_fallthru
      _
    // Predicated region
    $region6: #{embedding_generator_forward.1} parent=1 // pred_check
      _
    $region7: #{embedding_generator_forward.1} parent=1 // pred_check_branch
      %16 = sbr.rel (0) target = $region9
    $region8: #{embedding_generator_forward.1} parent=1 // pred_region
      _
    $region9: #{embedding_generator_forward.1} parent=1 // pred_fallthru
      _
    // Predicated region
    $region10: #{embedding_generator_forward.1} parent=1 // pred_check
      _
    $region11: #{embedding_generator_forward.1} parent=1 // pred_check_branch
      %18 = sbr.rel (0) target = $region13
    $region12: #{embedding_generator_forward.1} parent=1 // pred_region
      _
    $region13: #{embedding_generator_forward.1} parent=1 // pred_fallthru
      _
    // Predicated region
    $region14: #{embedding_generator_forward.1} parent=1 // pred_check
      _
    $region15: #{embedding_generator_forward.1} parent=1 // pred_check_branch
      %20 = sbr.rel (0) target = $region17
    $region16: #{embedding_generator_forward.1} parent=1 // pred_region
      %s22 = ssub.s32 1024, 1024
      %23 = vsyncadd [#allocation3], %s22
      %s24 = sshll.u32 [#allocation2], 4
      %s25 = int_to_ptr.vmem [resolvable:$true] %s24
      %30 = dma.hbm_to_vmem [thread:$0]  %s3, 1024, %s25, [#allocation3], 64, 64, 4
    $region17: #{embedding_generator_forward.1} parent=1 // pred_fallthru
      _
    // Predicated region
    $region18: #{embedding_generator_forward.1} parent=1 // pred_check
      _
    $region19: #{embedding_generator_forward.1} parent=1 // pred_check_branch
      %32 = sbr.rel (0) target = $region21
    $region20: #{embedding_generator_forward.1} parent=1 // pred_region
      _
    $region21: #{embedding_generator_forward.1} parent=1 // pred_fallthru
      _
    // Predicated region
    $region22: #{embedding_generator_forward.1} parent=1 // pred_check
      _
    $region23: #{embedding_generator_forward.1} parent=1 // pred_check_branch
      %34 = sbr.rel (0) target = $region25
    $region24: #{embedding_generator_forward.1} parent=1 // pred_region
      %35 = dma.done [#allocation3], 1024
    $region25: #{embedding_generator_forward.1} parent=1 // pred_fallthru
      _
    %v37 = vld [vmem:[%s0] sm:$0xff]
    %v38 = vld [vmem:[%s0 + $0x8] sm:$0xff]
    %v39 = vpack.c.bf16 %v38, %v37
    %v40 = vld [vmem:[%s1] sm:$0xf]
    %v41 = vld [vmem:[%s1 + $0x4] sm:$0xf]
    %v42 = vld [vmem:[%s1 + $0x8] sm:$0xf]
    %v43 = vld [vmem:[%s1 + $0xc] sm:$0xf]
    %v44 = vld [vmem:[%s2] sm:$0x1]
    %v46 = vlaneseq
    %v47 = vshrl.u32 %v46, 7
    %v48 = vsub.s32 0, %v47
    %v49 = vrot.slane %v44, %v48
    %v55 = vunpack.c.l.b16 %v40
    %v56 = vunpack.c.l.b16 %v41
    %v57 = vunpack.c.l.b16 %v42
    %v58 = vunpack.c.l.b16 %v43
    %v59 = vpack.c.b16 %v56, %v55
    %v60 = vpack.c.b16 %v58, %v57
    %vm63 = vcmask 261120
    %v65 = vsel %vm63, %v39, 0
    %67 = vmatprep.subr.bf16.mxu0 0
    %68 = vmatpush1.bf16.msra.mxu0 %v59
    %69 = vmatprep.subr.bf16.mxu0 0
    %70 = vmatpush1.bf16.msra.mxu0 %v60
    %71 = vmatprep.subr.bf16.mxu0 0
    %72 = vmatpush1.bf16.msra.mxu0 0
    %73 = vmatprep.subr.bf16.mxu0 0
    %74 = vmatpush1.bf16.msra.mxu0 0
    %75 = vmatprep.subr.bf16.mxu0 0
    %76 = vmatpush1.bf16.msra.mxu0 0
    %77 = vmatprep.subr.bf16.mxu0 0
    %78 = vmatpush1.bf16.msra.mxu0 0
    %79 = vmatprep.subr.bf16.mxu0 0
    %80 = vmatpush1.bf16.msra.mxu0 0
    %81 = vmatprep.subr.bf16.mxu0 0
    %82 = vmatpush1.bf16.msra.mxu0 0
    %83 = vmatprep.subr.bf16.mxu0 0
    %84 = vmatpush1.bf16.msra.mxu0 0
    %85 = vmatprep.subr.bf16.mxu0 0
    %86 = vmatpush1.bf16.msra.mxu0 0
    %87 = vmatprep.subr.bf16.mxu0 0
    %88 = vmatpush1.bf16.msra.mxu0 0
    %89 = vmatprep.subr.bf16.mxu0 0
    %90 = vmatpush1.bf16.msra.mxu0 0
    %91 = vmatprep.subr.bf16.mxu0 0
    %92 = vmatpush1.bf16.msra.mxu0 0
    %93 = vmatprep.subr.bf16.mxu0 0
    %94 = vmatpush1.bf16.msra.mxu0 0
    %95 = vmatprep.subr.bf16.mxu0 0
    %96 = vmatpush1.bf16.msra.mxu0 0
    %97 = vmatprep.subr.bf16.mxu0 0
    %98 = vmatpush1.bf16.msra.mxu0 0
    %99 = vmatprep.mubr.bf16.mxu0 0
    %100 = vmatmul.mubr.bf16.gmra.mrb[0].mxu0 %v65
    %v101 = vpop.f32.mrb[0].mxu0
    %v102 = vadd.f32 %v49, %v101
    %v103 = vpop.f32.mrb[0].mxu0
    %v104 = vpop.f32.mrb[0].mxu0
    %v105 = vadd.f32 %v49, %v104
    %v106 = vpop.f32.mrb[0].mxu0
    %107 = vdwg.mxu0
    %108 = vst [vmem:[%s5] sm:$0xff] %v102
    %109 = vst [vmem:[%s5 + $0x8] sm:$0xff] %v105
    %v110 = vld [vmem:[%s5] sm:$0xff]
    %v111 = vld [vmem:[%s5 + $0x8] sm:$0xff]
    %v112 = vpack.c.bf16 %v111, %v110
    %v113 = vld [vmem:[#allocation2] sm:$0xf]
    %v114 = vld [vmem:[#allocation2 + $0x4] sm:$0xf]
    %v115 = vld [vmem:[#allocation2 + $0x8] sm:$0xf]
    %v116 = vld [vmem:[#allocation2 + $0xc] sm:$0xf]
    %v117 = vld [vmem:[#allocation2 + $0x10] sm:$0xf]
    %v118 = vld [vmem:[#allocation2 + $0x14] sm:$0xf]
    %v119 = vld [vmem:[#allocation2 + $0x18] sm:$0xf]
    %v120 = vld [vmem:[#allocation2 + $0x1c] sm:$0xf]
    %v121 = vld [vmem:[#allocation2 + $0x20] sm:$0xf]
    %v122 = vld [vmem:[#allocation2 + $0x24] sm:$0xf]
    %v123 = vld [vmem:[#allocation2 + $0x28] sm:$0xf]
    %v124 = vld [vmem:[#allocation2 + $0x2c] sm:$0xf]
    %v125 = vld [vmem:[#allocation2 + $0x30] sm:$0xf]
    %v126 = vld [vmem:[#allocation2 + $0x34] sm:$0xf]
    %v127 = vld [vmem:[#allocation2 + $0x38] sm:$0xf]
    %v128 = vld [vmem:[#allocation2 + $0x3c] sm:$0xf]
    %v129 = vld [vmem:[%s4] sm:$0x1]
    %v131 = vlaneseq
    %v132 = vshrl.u32 %v131, 7
    %v133 = vsub.s32 0, %v132
    %v134 = vrot.slane %v129, %v133
    %v152 = vunpack.c.l.b16 %v113
    %v153 = vunpack.c.l.b16 %v114
    %v154 = vunpack.c.l.b16 %v115
    %v155 = vunpack.c.l.b16 %v116
    %v156 = vunpack.c.l.b16 %v117
    %v157 = vunpack.c.l.b16 %v118
    %v158 = vunpack.c.l.b16 %v119
    %v159 = vunpack.c.l.b16 %v120
    %v160 = vunpack.c.l.b16 %v121
    %v161 = vunpack.c.l.b16 %v122
    %v162 = vunpack.c.l.b16 %v123
    %v163 = vunpack.c.l.b16 %v124
    %v164 = vunpack.c.l.b16 %v125
    %v165 = vunpack.c.l.b16 %v126
    %v166 = vunpack.c.l.b16 %v127
    %v167 = vunpack.c.l.b16 %v128
    %v168 = vpack.c.b16 %v153, %v152
    %v169 = vpack.c.b16 %v155, %v154
    %v170 = vpack.c.b16 %v157, %v156
    %v171 = vpack.c.b16 %v159, %v158
    %v172 = vpack.c.b16 %v161, %v160
    %v173 = vpack.c.b16 %v163, %v162
    %v174 = vpack.c.b16 %v165, %v164
    %v175 = vpack.c.b16 %v167, %v166
    %184 = vmatprep.subr.bf16.mxu0 0
    %185 = vmatpush1.bf16.msra.mxu0 %v168
    %186 = vmatprep.subr.bf16.mxu0 0
    %187 = vmatpush1.bf16.msra.mxu0 %v169
    %188 = vmatprep.subr.bf16.mxu0 0
    %189 = vmatpush1.bf16.msra.mxu0 %v170
    %190 = vmatprep.subr.bf16.mxu0 0
    %191 = vmatpush1.bf16.msra.mxu0 %v171
    %192 = vmatprep.subr.bf16.mxu0 0
    %193 = vmatpush1.bf16.msra.mxu0 %v172
    %194 = vmatprep.subr.bf16.mxu0 0
    %195 = vmatpush1.bf16.msra.mxu0 %v173
    %196 = vmatprep.subr.bf16.mxu0 0
    %197 = vmatpush1.bf16.msra.mxu0 %v174
    %198 = vmatprep.subr.bf16.mxu0 0
    %199 = vmatpush1.bf16.msra.mxu0 %v175
    %200 = vmatprep.subr.bf16.mxu0 0
    %201 = vmatpush1.bf16.msra.mxu0 0
    %202 = vmatprep.subr.bf16.mxu0 0
    %203 = vmatpush1.bf16.msra.mxu0 0
    %204 = vmatprep.subr.bf16.mxu0 0
    %205 = vmatpush1.bf16.msra.mxu0 0
    %206 = vmatprep.subr.bf16.mxu0 0
    %207 = vmatpush1.bf16.msra.mxu0 0
    %208 = vmatprep.subr.bf16.mxu0 0
    %209 = vmatpush1.bf16.msra.mxu0 0
    %210 = vmatprep.subr.bf16.mxu0 0
    %211 = vmatpush1.bf16.msra.mxu0 0
    %212 = vmatprep.subr.bf16.mxu0 0
    %213 = vmatpush1.bf16.msra.mxu0 0
    %214 = vmatprep.subr.bf16.mxu0 0
    %215 = vmatpush1.bf16.msra.mxu0 0
    %216 = vmatprep.mubr.bf16.mxu0 0
    %217 = vmatmul.mubr.bf16.gmra.mrb[0].mxu0 %v112
    %v218 = vpop.f32.mrb[0].mxu0
    %v219 = vadd.f32 %v134, %v218
    %v220 = vpop.f32.mrb[0].mxu0
    %v221 = vpop.f32.mrb[0].mxu0
    %v222 = vadd.f32 %v134, %v221
    %v223 = vpop.f32.mrb[0].mxu0
    %224 = vdwg.mxu0
    %225 = vst [vmem:[%s6] sm:$0xff] %v219
    %226 = vst [vmem:[%s6 + $0x8] sm:$0xff] %v222
    // Predicated region
    $region26: #{embedding_generator_forward.1} parent=1 // pred_check
      _
    $region27: #{embedding_generator_forward.1} parent=1 // pred_check_branch
      %228 = sbr.rel (0) target = $region29
    $region28: #{embedding_generator_forward.1} parent=1 // pred_region
      _
    $region29: #{embedding_generator_forward.1} parent=1 // pred_fallthru
      _
    // Predicated region
    $region30: #{embedding_generator_forward.1} parent=1 // pred_check
      _
    $region31: #{embedding_generator_forward.1} parent=1 // pred_check_branch
      %230 = sbr.rel (0) target = $region33
    $region32: #{embedding_generator_forward.1} parent=1 // pred_region
      _
    $region33: #{embedding_generator_forward.1} parent=1 // pred_fallthru
      _
    // Predicated region
    $region34: #{embedding_generator_forward.1} parent=1 // pred_check
      _
    $region35: #{embedding_generator_forward.1} parent=1 // pred_check_branch
      %232 = sbr.rel (0) target = $region37
    $region36: #{embedding_generator_forward.1} parent=1 // pred_region
      _
    $region37: #{embedding_generator_forward.1} parent=1 // pred_fallthru
      _
    // Predicated region
    $region38: #{embedding_generator_forward.1} parent=1 // pred_check
      _
    $region39: #{embedding_generator_forward.1} parent=1 // pred_check_branch
      %234 = sbr.rel (0) target = $region41
    $region40: #{embedding_generator_forward.1} parent=1 // pred_region
      _
    $region41: #{embedding_generator_forward.1} parent=1 // pred_fallthru
      _
    %235 = vsyncpa [#allocation3], 1

</llo_original>
